<compile_context>
chip_gen: v7x
topology: tpu7x:2x2x1
jax: 0.10.0
libtpu: 0.0.40
codegen_flags: <defaults>
</compile_context>

<pallas_src>
import jax
import jax.numpy as jnp
from jax.experimental import pallas as pl
from jax.experimental.pallas import tpu as pltpu


def _pick_row_tile(n):
    """Largest power-of-two row panel < n that divides n (falls back to n)."""
    for tm in (512, 256, 128, 64, 32, 16, 8):
        if tm < n and n % tm == 0:
            return tm
    return n


def gin_kernel(ids_ref, emb_ref, a_ref, w_ref, b_ref, m_ref, out_ref,
               h0_s, h1_s, h2_s):
    layer = pl.program_id(0)          # 0: conv1 (+relu), 1: conv2 (+readout)
    blk = pl.program_id(1)            # row-panel index
    n_blk = pl.num_programs(1)
    TM, N = a_ref.shape               # panel rows, total nodes
    row0 = pl.multiple_of(blk * TM, TM)

    # --- grid step (0, 0): fused embedding lookup for ALL nodes (exact one-hot gather) ---
    @pl.when(jnp.logical_and(layer == 0, blk == 0))
    def _():
        vocab = emb_ref.shape[0]
        onehot = (jax.lax.broadcasted_iota(jnp.int32, (N, vocab), 1) == ids_ref[...])
        h0_s[...] = jnp.dot(onehot.astype(jnp.float32), emb_ref[...],
                            preferred_element_type=jnp.float32)

    a_blk = a_ref[...]                # [TM, N] bf16 (0/1 adjacency panel, exact)
    w = w_ref[...]                    # [H, H]  bf16 (this layer's W^T)
    b = b_ref[...]                    # [1, H]  f32

    # --- layer phase 0: h1[rows] = relu( lin1( h0[rows] + A[rows,:] @ h0 ) ) ---
    @pl.when(layer == 0)
    def _():
        h_all = h0_s[...].astype(jnp.bfloat16)                      # [N, H]
        agg = jnp.dot(a_blk, h_all, preferred_element_type=jnp.float32)
        pre = h0_s[pl.ds(row0, TM), :] + agg                        # (1+eps)*h + sum, eps=0
        z = jnp.dot(pre.astype(jnp.bfloat16), w,
                    preferred_element_type=jnp.float32) + b
        h1_s[pl.ds(row0, TM), :] = jnp.maximum(z, 0.0)              # F.relu

    # --- layer phase 1: h2[rows] = lin2( h1[rows] + A[rows,:] @ h1 ) ---
    @pl.when(layer == 1)
    def _():
        h_all = h1_s[...].astype(jnp.bfloat16)
        agg = jnp.dot(a_blk, h_all, preferred_element_type=jnp.float32)
        pre = h1_s[pl.ds(row0, TM), :] + agg
        z = jnp.dot(pre.astype(jnp.bfloat16), w,
                    preferred_element_type=jnp.float32) + b
        h2_s[pl.ds(row0, TM), :] = z

    # --- final step: dgl.mean_nodes as one (G,N) @ (N,H) matmul over complete h2 ---
    @pl.when(jnp.logical_and(layer == 1, blk == n_blk - 1))
    def _():
        out_ref[...] = jnp.dot(m_ref[...], h2_s[...].astype(jnp.bfloat16),
                               preferred_element_type=jnp.float32)


@jax.jit
def gin4drug_struc_forward(node_ids, adj, mean_mat, emb, w1, b1, w2, b2):
    """Forward pass; everything after building the (dense) batched-graph inputs runs
    in one Pallas kernel (embedding gather included)."""
    N = node_ids.shape[0]
    in_feats, H = emb.shape
    G = mean_mat.shape[0]
    TM = _pick_row_tile(N)

    ids2d = node_ids.reshape(N, 1).astype(jnp.int32)
    adj_bf16 = adj.astype(jnp.bfloat16)                      # 0/1 -> exact in bf16
    mean_bf16 = mean_mat.astype(jnp.bfloat16)                # [G, N]
    # Pre-transpose Linear weights (x @ W^T) and stack per-layer params; folded by XLA.
    w_stack = jnp.stack([jnp.transpose(w1), jnp.transpose(w2)]).astype(jnp.bfloat16)
    b_stack = jnp.stack([b1.reshape(1, H), b2.reshape(1, H)]).astype(jnp.float32)

    # Explicit scoped-VMEM budget (double-buffered streamed panels + resident buffers).
    est = (2 * TM * N * 2           # adjacency row panel, bf16, double-buffered
           + G * N * 2              # mean-pooling matrix, bf16
           + 2 * (2 * H * H * 2)    # stacked weights, bf16
           + 2 * (2 * H * 4)        # stacked biases
           + N * 4                  # node ids
           + in_feats * H * 4       # embedding table
           + G * H * 4              # output
           + 3 * N * H * 4)         # h0 / h1 / h2 activation scratches
    vmem_limit = int(2 * est) + (4 << 20)

    grid_spec = pltpu.PrefetchScalarGridSpec(
        num_scalar_prefetch=0,
        grid=(2, N // TM),                                       # (layer phase, row panel)
        in_specs=[
            pl.BlockSpec((N, 1), lambda l, i: (0, 0)),           # node ids
            pl.BlockSpec((in_feats, H), lambda l, i: (0, 0)),    # embedding table
            pl.BlockSpec((TM, N), lambda l, i: (i, 0)),          # adjacency row panel
            pl.BlockSpec((None, H, H), lambda l, i: (l, 0, 0)),  # this layer's W^T
            pl.BlockSpec((None, 1, H), lambda l, i: (l, 0, 0)),  # this layer's bias
            pl.BlockSpec((G, N), lambda l, i: (0, 0)),           # mean-pooling matrix
        ],
        out_specs=pl.BlockSpec((G, H), lambda l, i: (0, 0)),     # resident output
        scratch_shapes=[
            pltpu.VMEM((N, H), jnp.float32),                     # h0
            pltpu.VMEM((N, H), jnp.float32),                     # h1
            pltpu.VMEM((N, H), jnp.float32),                     # h2
        ],
    )

    return pl.pallas_call(
        gin_kernel,
        out_shape=jax.ShapeDtypeStruct((G, H), jnp.float32),
        grid_spec=grid_spec,
        compiler_params=pltpu.CompilerParams(
            dimension_semantics=("arbitrary", "arbitrary"),
            vmem_limit_bytes=vmem_limit,
        ),
    )(ids2d, emb.astype(jnp.float32), adj_bf16, w_stack, b_stack, mean_bf16)


def reference_forward(node_ids, adj, mean_mat, emb, w1, b1, w2, b2):
    """Pure-JAX f32 reference mirroring the PyTorch/DGL semantics."""
    h = emb[node_ids].astype(jnp.float32)
    h = (h + adj @ h) @ w1.T + b1
    h = jnp.maximum(h, 0.0)
    h = (h + adj @ h) @ w2.T + b2
    return mean_mat @ h


if __name__ == "__main__":
    key = jax.random.PRNGKey(0)

    in_feats = 10      # embedding vocab size (node-type ids)
    h_feats = 32       # hidden width
    n_per_graph = 8
    n_graphs = 2
    N = n_per_graph * n_graphs   # 16 nodes total (batched graph)

    k_emb, k_w1, k_b1, k_w2, k_b2, k_ids, k_adj = jax.random.split(key, 7)

    emb = jax.random.normal(k_emb, (in_feats, h_feats), dtype=jnp.float32) * 0.1
    w1 = jax.random.normal(k_w1, (h_feats, h_feats), dtype=jnp.float32) * 0.1
    b1 = jax.random.normal(k_b1, (h_feats,), dtype=jnp.float32) * 0.1
    w2 = jax.random.normal(k_w2, (h_feats, h_feats), dtype=jnp.float32) * 0.1
    b2 = jax.random.normal(k_b2, (h_feats,), dtype=jnp.float32) * 0.1

    # Node features: integer node-type ids (input to nn.Embedding).
    node_ids = jax.random.randint(k_ids, (N,), 0, in_feats)

    # Batched graph as block-diagonal dense adjacency (A[i, j] = 1 iff edge j -> i).
    dense = (jax.random.uniform(k_adj, (N, N)) < 0.3).astype(jnp.float32)
    block_mask = jnp.kron(jnp.eye(n_graphs, dtype=jnp.float32),
                          jnp.ones((n_per_graph, n_per_graph), dtype=jnp.float32))
    adj = dense * block_mask * (1.0 - jnp.eye(N, dtype=jnp.float32))  # no self-loops

    # Mean-pooling matrix: M[g, i] = 1/|V_g| for nodes i belonging to graph g.
    graph_ids = jnp.repeat(jnp.arange(n_graphs), n_per_graph)
    member = (graph_ids[None, :] == jnp.arange(n_graphs)[:, None]).astype(jnp.float32)
    mean_mat = member / jnp.sum(member, axis=1, keepdims=True)

    out = gin4drug_struc_forward(node_ids, adj, mean_mat, emb, w1, b1, w2, b2)
    out = jax.block_until_ready(out)

    ref = reference_forward(node_ids, adj, mean_mat, emb, w1, b1, w2, b2)
    assert out.shape == (n_graphs, h_feats)
    # bf16 MXU operands with f32 accumulation -> relaxed tolerance vs the f32 reference.
    assert jnp.allclose(out, ref, atol=2e-2, rtol=2e-2), "kernel vs reference mismatch"

    print("KERNEL_OK")
</pallas_src>

<mosaic_0001>
module attributes {stable_mosaic.version = 11 : i64} {
  func.func @gin_kernel(%arg0: i32, %arg1: i32, %arg2: memref<16x1xi32, #tpu.memory_space<vmem>>, %arg3: memref<10x32xf32, #tpu.memory_space<vmem>>, %arg4: memref<8x16xbf16, #tpu.memory_space<vmem>>, %arg5: memref<1x32x32xbf16, #tpu.memory_space<vmem>>, %arg6: memref<1x1x32xf32, #tpu.memory_space<vmem>>, %arg7: memref<2x16xbf16, #tpu.memory_space<vmem>>, %arg8: memref<2x32xf32, #tpu.memory_space<vmem>>, %arg9: memref<16x32xf32, #tpu.memory_space<vmem>>, %arg10: memref<16x32xf32, #tpu.memory_space<vmem>>, %arg11: memref<16x32xf32, #tpu.memory_space<vmem>>) attributes {dimension_semantics = [#tpu.dimension_semantics<arbitrary>, #tpu.dimension_semantics<arbitrary>], iteration_bounds = array<i64: 2, 2>, scalar_prefetch = 0 : i64, scratch_operands = 3 : i64, tpu.core_type = #tpu.core_type<tc>, window_params = [{pipeline_mode = #tpu.pipeline_mode<synchronous>, transform_indices = @transform_0, window_bounds = array<i64: 16, 1>}, {pipeline_mode = #tpu.pipeline_mode<synchronous>, transform_indices = @transform_1, window_bounds = array<i64: 10, 32>}, {transform_indices = @transform_2, window_bounds = array<i64: 8, 16>}, {transform_indices = @transform_3, window_bounds = array<i64: 1, 32, 32>}, {transform_indices = @transform_4, window_bounds = array<i64: 1, 1, 32>}, {pipeline_mode = #tpu.pipeline_mode<synchronous>, transform_indices = @transform_5, window_bounds = array<i64: 2, 16>}, {pipeline_mode = #tpu.pipeline_mode<synchronous>, transform_indices = @transform_6, window_bounds = array<i64: 2, 32>}]} {
    %c8_i32 = arith.constant 8 : i32
    %0 = arith.muli %arg1, %c8_i32 : i32
    %1 = tpu.assume_multiple %0, 8 : i32
    %c0_i32 = arith.constant 0 : i32
    %2 = arith.cmpi eq, %arg0, %c0_i32 : i32
    %c0_i32_0 = arith.constant 0 : i32
    %3 = arith.cmpi eq, %arg1, %c0_i32_0 : i32
    %4 = arith.andi %2, %3 : i1
    %5 = arith.extui %4 : i1 to i32
    %c0_i32_1 = arith.constant 0 : i32
    %6 = arith.cmpi ne, %5, %c0_i32_1 : i32
    scf.if %6 {
      %23 = tpu.iota {dimensions = array<i32: 1>} : vector<16x10xi32>
      %c0_15 = arith.constant 0 : index
      %c0_16 = arith.constant 0 : index
      %24 = vector.load %arg2[%c0_15, %c0_16] : memref<16x1xi32, #tpu.memory_space<vmem>>, vector<16x1xi32>
      %25 = vector.broadcast %24 : vector<16x1xi32> to vector<16x10xi32>
      %26 = arith.cmpi eq, %23, %25 : vector<16x10xi32>
      %27 = arith.extui %26 : vector<16x10xi1> to vector<16x10xi32>
      %28 = arith.sitofp %27 : vector<16x10xi32> to vector<16x10xf32>
      %c0_17 = arith.constant 0 : index
      %c0_18 = arith.constant 0 : index
      %29 = vector.load %arg3[%c0_17, %c0_18] : memref<10x32xf32, #tpu.memory_space<vmem>>, vector<10x32xf32>
      %cst = arith.constant dense<0.000000e+00> : vector<16x32xf32>
      %30 = tpu.matmul %28, %29, %cst {dimension_numbers = #tpu.dot_dimension_numbers<[1], [0], [0], [1], [0, 0, 1, 1], [], []>} : vector<16x10xf32>, vector<10x32xf32>, vector<16x32xf32> -> vector<16x32xf32>
      %c0_19 = arith.constant 0 : index
      %c0_20 = arith.constant 0 : index
      %31 = vector.load %arg9[%c0_19, %c0_20] : memref<16x32xf32, #tpu.memory_space<vmem>>, vector<16x32xf32>
      tpu.vector_store %arg9[%c0_19, %c0_20], %30 {strides = array<i32>} : memref<16x32xf32, #tpu.memory_space<vmem>>, vector<16x32xf32>,
    } else {
    }
    %c0 = arith.constant 0 : index
    %c0_2 = arith.constant 0 : index
    %7 = vector.load %arg4[%c0, %c0_2] : memref<8x16xbf16, #tpu.memory_space<vmem>>, vector<8x16xbf16>
    %c0_3 = arith.constant 0 : index
    %c0_4 = arith.constant 0 : index
    %c0_5 = arith.constant 0 : index
    %8 = vector.load %arg5[%c0_3, %c0_4, %c0_5] : memref<1x32x32xbf16, #tpu.memory_space<vmem>>, vector<1x32x32xbf16>
    %9 = vector.shape_cast %8 : vector<1x32x32xbf16> to vector<32x32xbf16>
    %c0_6 = arith.constant 0 : index
    %c0_7 = arith.constant 0 : index
    %c0_8 = arith.constant 0 : index
    %10 = vector.load %arg6[%c0_6, %c0_7, %c0_8] : memref<1x1x32xf32, #tpu.memory_space<vmem>>, vector<1x1x32xf32>
    %11 = vector.shape_cast %10 : vector<1x1x32xf32> to vector<1x32xf32>
    %c0_i32_9 = arith.constant 0 : i32
    %12 = arith.cmpi eq, %arg0, %c0_i32_9 : i32
    %13 = arith.extui %12 : i1 to i32
    %c0_i32_10 = arith.constant 0 : i32
    %14 = arith.cmpi ne, %13, %c0_i32_10 : i32
    scf.if %14 {
      %c0_15 = arith.constant 0 : index
      %c0_16 = arith.constant 0 : index
      %23 = vector.load %arg9[%c0_15, %c0_16] : memref<16x32xf32, #tpu.memory_space<vmem>>, vector<16x32xf32>
      %24 = arith.truncf %23 : vector<16x32xf32> to vector<16x32xbf16>
      %cst = arith.constant dense<0.000000e+00> : vector<8x32xf32>
      %25 = tpu.matmul %7, %24, %cst {dimension_numbers = #tpu.dot_dimension_numbers<[1], [0], [0], [1], [0, 0, 1, 1], [], []>} : vector<8x16xbf16>, vector<16x32xbf16>, vector<8x32xf32> -> vector<8x32xf32>
      %26 = arith.index_cast %1 : i32 to index
      %c0_17 = arith.constant 0 : index
      %27 = vector.load %arg9[%26, %c0_17] : memref<16x32xf32, #tpu.memory_space<vmem>>, vector<8x32xf32>
      %28 = arith.addf %27, %25 : vector<8x32xf32>
      %29 = arith.truncf %28 : vector<8x32xf32> to vector<8x32xbf16>
      %cst_18 = arith.constant dense<0.000000e+00> : vector<8x32xf32>
      %30 = tpu.matmul %29, %9, %cst_18 {dimension_numbers = #tpu.dot_dimension_numbers<[1], [0], [0], [1], [0, 0, 1, 1], [], []>} : vector<8x32xbf16>, vector<32x32xbf16>, vector<8x32xf32> -> vector<8x32xf32>
      %31 = vector.broadcast %11 : vector<1x32xf32> to vector<8x32xf32>
      %32 = arith.addf %30, %31 : vector<8x32xf32>
      %cst_19 = arith.constant 0.000000e+00 : f32
      %33 = vector.broadcast %cst_19 : f32 to vector<8x32xf32>
      %34 = arith.maximumf %32, %33 : vector<8x32xf32>
      %35 = arith.index_cast %1 : i32 to index
      %c0_20 = arith.constant 0 : index
      %36 = vector.load %arg10[%35, %c0_20] : memref<16x32xf32, #tpu.memory_space<vmem>>, vector<8x32xf32>
      tpu.vector_store %arg10[%35, %c0_20], %34 {strides = array<i32>} : memref<16x32xf32, #tpu.memory_space<vmem>>, vector<8x32xf32>,
    } else {
    }
    %c1_i32 = arith.constant 1 : i32
    %15 = arith.cmpi eq, %arg0, %c1_i32 : i32
    %16 = arith.extui %15 : i1 to i32
    %c0_i32_11 = arith.constant 0 : i32
    %17 = arith.cmpi ne, %16, %c0_i32_11 : i32
    scf.if %17 {
      %c0_15 = arith.constant 0 : index
      %c0_16 = arith.constant 0 : index
      %23 = vector.load %arg10[%c0_15, %c0_16] : memref<16x32xf32, #tpu.memory_space<vmem>>, vector<16x32xf32>
      %24 = arith.truncf %23 : vector<16x32xf32> to vector<16x32xbf16>
      %cst = arith.constant dense<0.000000e+00> : vector<8x32xf32>
      %25 = tpu.matmul %7, %24, %cst {dimension_numbers = #tpu.dot_dimension_numbers<[1], [0], [0], [1], [0, 0, 1, 1], [], []>} : vector<8x16xbf16>, vector<16x32xbf16>, vector<8x32xf32> -> vector<8x32xf32>
      %26 = arith.index_cast %1 : i32 to index
      %c0_17 = arith.constant 0 : index
      %27 = vector.load %arg10[%26, %c0_17] : memref<16x32xf32, #tpu.memory_space<vmem>>, vector<8x32xf32>
      %28 = arith.addf %27, %25 : vector<8x32xf32>
      %29 = arith.truncf %28 : vector<8x32xf32> to vector<8x32xbf16>
      %cst_18 = arith.constant dense<0.000000e+00> : vector<8x32xf32>
      %30 = tpu.matmul %29, %9, %cst_18 {dimension_numbers = #tpu.dot_dimension_numbers<[1], [0], [0], [1], [0, 0, 1, 1], [], []>} : vector<8x32xbf16>, vector<32x32xbf16>, vector<8x32xf32> -> vector<8x32xf32>
      %31 = vector.broadcast %11 : vector<1x32xf32> to vector<8x32xf32>
      %32 = arith.addf %30, %31 : vector<8x32xf32>
      %33 = arith.index_cast %1 : i32 to index
      %c0_19 = arith.constant 0 : index
      %34 = vector.load %arg11[%33, %c0_19] : memref<16x32xf32, #tpu.memory_space<vmem>>, vector<8x32xf32>
      tpu.vector_store %arg11[%33, %c0_19], %32 {strides = array<i32>} : memref<16x32xf32, #tpu.memory_space<vmem>>, vector<8x32xf32>,
    } else {
    }
    %c1_i32_12 = arith.constant 1 : i32
    %18 = arith.cmpi eq, %arg0, %c1_i32_12 : i32
    %c1_i32_13 = arith.constant 1 : i32
    %19 = arith.cmpi eq, %arg1, %c1_i32_13 : i32
    %20 = arith.andi %18, %19 : i1
    %21 = arith.extui %20 : i1 to i32
    %c0_i32_14 = arith.constant 0 : i32
    %22 = arith.cmpi ne, %21, %c0_i32_14 : i32
    scf.if %22 {
      %c0_15 = arith.constant 0 : index
      %c0_16 = arith.constant 0 : index
      %23 = vector.load %arg7[%c0_15, %c0_16] : memref<2x16xbf16, #tpu.memory_space<vmem>>, vector<2x16xbf16>
      %c0_17 = arith.constant 0 : index
      %c0_18 = arith.constant 0 : index
      %24 = vector.load %arg11[%c0_17, %c0_18] : memref<16x32xf32, #tpu.memory_space<vmem>>, vector<16x32xf32>
      %25 = arith.truncf %24 : vector<16x32xf32> to vector<16x32xbf16>
      %cst = arith.constant dense<0.000000e+00> : vector<2x32xf32>
      %26 = tpu.matmul %23, %25, %cst {dimension_numbers = #tpu.dot_dimension_numbers<[1], [0], [0], [1], [0, 0, 1, 1], [], []>} : vector<2x16xbf16>, vector<16x32xbf16>, vector<2x32xf32> -> vector<2x32xf32>
      %c0_19 = arith.constant 0 : index
      %c0_20 = arith.constant 0 : index
      %27 = vector.load %arg8[%c0_19, %c0_20] : memref<2x32xf32, #tpu.memory_space<vmem>>, vector<2x32xf32>
      tpu.vector_store %arg8[%c0_19, %c0_20], %26 {strides = array<i32>} : memref<2x32xf32, #tpu.memory_space<vmem>>, vector<2x32xf32>,
    } else {
    }
    return
  }
  func.func @transform_0(%arg0: i32, %arg1: i32) -> (i32, i32) {
    %c0_i32 = arith.constant 0 : i32
    %c0_i32_0 = arith.constant 0 : i32
    %c0_i32_1 = arith.constant 0 : i32
    return %c0_i32, %c0_i32_0 : i32, i32
  }
  func.func @transform_1(%arg0: i32, %arg1: i32) -> (i32, i32) {
    %c0_i32 = arith.constant 0 : i32
    %c0_i32_0 = arith.constant 0 : i32
    %c0_i32_1 = arith.constant 0 : i32
    return %c0_i32, %c0_i32_0 : i32, i32
  }
  func.func @transform_2(%arg0: i32, %arg1: i32) -> (i32, i32) {
    %c0_i32 = arith.constant 0 : i32
    %c0_i32_0 = arith.constant 0 : i32
    return %arg1, %c0_i32 : i32, i32
  }
  func.func @transform_3(%arg0: i32, %arg1: i32) -> (i32, i32, i32) {
    %c0_i32 = arith.constant 0 : i32
    %c0_i32_0 = arith.constant 0 : i32
    %c0_i32_1 = arith.constant 0 : i32
    return %arg0, %c0_i32, %c0_i32_0 : i32, i32, i32
  }
  func.func @transform_4(%arg0: i32, %arg1: i32) -> (i32, i32, i32) {
    %c0_i32 = arith.constant 0 : i32
    %c0_i32_0 = arith.constant 0 : i32
    %c0_i32_1 = arith.constant 0 : i32
    return %arg0, %c0_i32, %c0_i32_0 : i32, i32, i32
  }
  func.func @transform_5(%arg0: i32, %arg1: i32) -> (i32, i32) {
    %c0_i32 = arith.constant 0 : i32
    %c0_i32_0 = arith.constant 0 : i32
    %c0_i32_1 = arith.constant 0 : i32
    return %c0_i32, %c0_i32_0 : i32, i32
  }
  func.func @transform_6(%arg0: i32, %arg1: i32) -> (i32, i32) {
    %c0_i32 = arith.constant 0 : i32
    %c0_i32_0 = arith.constant 0 : i32
    %c0_i32_1 = arith.constant 0 : i32
    return %c0_i32, %c0_i32_0 : i32, i32
  }
}

</mosaic_0001>

<llo_original>
// kernel: gin4drug_struc_forward.1
$region0: #{gin4drug_struc_forward.1}
  #allocation0 [shape = 'u32[]', space=smem, size = 0x4, offset = 0x4, fixed_abs, tag = 'smem constant byte address 0x4 - core index']
  #allocation1 [shape = 'u32[144,128]{1,0:T(1,128)}', space=vmem, size = 0x12000, scoped, tag = 'internal scratch']
  #allocation2 [shape = 'f32[16,32]{1,0:T(8,128)}', space=vmem, size = 0x2000, scoped, tag = 'scratch operand']
  #allocation3 [shape = 'f32[16,32]{1,0:T(8,128)}', space=vmem, size = 0x2000, scoped, tag = 'scratch operand']
  #allocation4 [shape = 'f32[16,32]{1,0:T(8,128)}', space=vmem, size = 0x2000, scoped, tag = 'scratch operand']
  %s0 = inlined_call_operand.vmem [shape: s32[16,1], index: 0, kind: input, shape index: {}]
  %s1 = inlined_call_operand.vmem [shape: f32[10,32], index: 1, kind: input, shape index: {}]
  %s2 = inlined_call_operand.vmem [shape: bf16[16,16], index: 2, kind: input, shape index: {}]
  %s3 = inlined_call_operand.vmem [shape: bf16[2,32,32], index: 3, kind: input, shape index: {}]
  %s4 = inlined_call_operand.vmem [shape: f32[2,1,32], index: 4, kind: input, shape index: {}]
  %s5 = inlined_call_operand.vmem [shape: bf16[2,16], index: 5, kind: input, shape index: {}]
  %s6 = inlined_call_operand.hbm [shape: f32[2,32], index: 6, kind: output, shape index: {}]
  %s7 = sld [smem:[#allocation0]]
  $region73: #{gin4drug_struc_forward.1} parent=0
    _
  %s9 = ssub.s32 1, %s7
  %s10 = scalar_select 0, %s9, %s7
  $region1: #{gin4drug_struc_forward.1} parent=0
    #allocation5 [shape = 'u8[1024]{0}', space=vmem, size = 0x400, scoped, tag = 'output window, operand 0, single buffered']
    #allocation6 [shape = 's32[2]{0}', space=sflag, size = 0x8, scoped, tag = 'scoped memory for gin4drug_struc_forward.1']
    %11 = vsyncpa [#allocation6], 0
    loop: start=0, step=1, limit=6
    $region2: #{gin4drug_struc_forward.1} parent=1 // loop_pre_header
      _
    $region3: #{gin4drug_struc_forward.1} parent=1 // loop_header
      %s13 = sphi 0, %s17
      %p14 = scmp.ge.s32.totalorder %s13, 6
      %s20 = sphi 0, %s32
      %s21 = sphi 0, %s28
      %s22 = sphi 0, %s20
      %s23 = sphi 0, %s21
      %s24 = sphi 0, %s22
      %s25 = sphi 0, %s23
      %s33 = sphi 0, %s33
      %s35 = sphi 0, %s33
      %s36 = sphi 0, %s35
      %s50 = sphi 0, %s36
      %s54 = sphi 0, %s54
      %s56 = sphi 0, %s54
      %s57 = sphi 0, %s56
      %s71 = sphi 0, %s57
      %s77 = sphi 0, %s79
      %s80 = sphi 0, %s77
      %s81 = sphi 0, %s80
      %s97 = sphi 0, %s81
      %s103 = sphi 0, %s105
      %s106 = sphi 0, %s103
      %s107 = sphi 0, %s106
      %s123 = sphi 0, %s107
      %s129 = sphi 0, %s131
      %s132 = sphi 0, %s129
      %s133 = sphi 0, %s132
      %s149 = sphi 0, %s133
      %s153 = sphi 0, %s153
      %s155 = sphi 0, %s153
      %s156 = sphi 0, %s155
      %s170 = sphi 0, %s156
      %s174 = sphi 0, %s174
      %s176 = sphi 0, %s174
      %s177 = sphi 0, %s176
      %s191 = sphi 0, %s177
    $region4: #{gin4drug_struc_forward.1} parent=1 // loop_header_branch
      %16 = sbr.rel (%p14) target = $region8
    $region5: #{gin4drug_struc_forward.1} parent=1 // loop_body
      %s18 = ssub.s32 %s13, 1
      %s19 = ssub.s32 %s13, 2
      %s26 = sadd.s32 1, %s21
      %p27 = scmp.ge.s32.totalorder %s26, 2
      %s28 = scalar_select %p27, 0, %s26
      %s29 = sadd.s32 1, %s20
      %s30 = scalar_select %p27, %s29, %s20
      %p31 = scmp.ge.s32.totalorder %s30, 2
      %s32 = scalar_select %p31, 0, %s30
      %s34 = sadd.s32 %s33, 1
      %p37 = scmp.eq.s32.totalorder %s13, 3
      %p38 = scmp.ne.s32.totalorder %s33, %s35
      %p39 = scmp.eq.s32.totalorder %s13, 0
      %p40 = por %p38, %p39
      %p41 = scmp.ne.s32.totalorder %s33, %s35
      %p42 = scmp.eq.s32.totalorder %s18, 3
      %p43 = por %p41, %p42
      %p44 = scmp.ne.s32.totalorder %s35, %s36
      %p45 = scmp.eq.s32.totalorder %s18, 0
      %p46 = por %p44, %p45
      %p47 = scmp.ne.s32.totalorder %s35, %s36
      %p48 = scmp.eq.s32.totalorder %s19, 3
      %p49 = por %p47, %p48
      %p51 = scmp.ne.s32.totalorder %s36, %s50
      %p52 = scmp.eq.s32.totalorder %s19, 0
      %p53 = por %p51, %p52
      %s55 = sadd.s32 %s54, 1
      %p58 = scmp.eq.s32.totalorder %s13, 3
      %p59 = scmp.ne.s32.totalorder %s54, %s56
      %p60 = scmp.eq.s32.totalorder %s13, 0
      %p61 = por %p59, %p60
      %p62 = scmp.ne.s32.totalorder %s54, %s56
      %p63 = scmp.eq.s32.totalorder %s18, 3
      %p64 = por %p62, %p63
      %p65 = scmp.ne.s32.totalorder %s56, %s57
      %p66 = scmp.eq.s32.totalorder %s18, 0
      %p67 = por %p65, %p66
      %p68 = scmp.ne.s32.totalorder %s56, %s57
      %p69 = scmp.eq.s32.totalorder %s19, 3
      %p70 = por %p68, %p69
      %p72 = scmp.ne.s32.totalorder %s57, %s71
      %p73 = scmp.eq.s32.totalorder %s19, 0
      %p74 = por %p72, %p73
      %s75 = ssub.s32 %s21, %s28
      %p76 = scmp.eq.s32.totalorder %s75, 0
      %s78 = sadd.s32 %s77, 1
      %s79 = scalar_select %p76, %s77, %s78
      %p82 = pneg %p76
      %p83 = scmp.eq.s32.totalorder %s13, 3
      %p84 = por %p82, %p83
      %p85 = scmp.ne.s32.totalorder %s77, %s80
      %p86 = scmp.eq.s32.totalorder %s13, 0
      %p87 = por %p85, %p86
      %p88 = scmp.ne.s32.totalorder %s77, %s80
      %p89 = scmp.eq.s32.totalorder %s18, 3
      %p90 = por %p88, %p89
      %p91 = scmp.ne.s32.totalorder %s80, %s81
      %p92 = scmp.eq.s32.totalorder %s18, 0
      %p93 = por %p91, %p92
      %p94 = scmp.ne.s32.totalorder %s80, %s81
      %p95 = scmp.eq.s32.totalorder %s19, 3
      %p96 = por %p94, %p95
      %p98 = scmp.ne.s32.totalorder %s81, %s97
      %p99 = scmp.eq.s32.totalorder %s19, 0
      %p100 = por %p98, %p99
      %s101 = ssub.s32 %s20, %s32
      %p102 = scmp.eq.s32.totalorder %s101, 0
      %s104 = sadd.s32 %s103, 1
      %s105 = scalar_select %p102, %s103, %s104
      %p108 = pneg %p102
      %p109 = scmp.eq.s32.totalorder %s13, 3
      %p110 = por %p108, %p109
      %p111 = scmp.ne.s32.totalorder %s103, %s106
      %p112 = scmp.eq.s32.totalorder %s13, 0
      %p113 = por %p111, %p112
      %p114 = scmp.ne.s32.totalorder %s103, %s106
      %p115 = scmp.eq.s32.totalorder %s18, 3
      %p116 = por %p114, %p115
      %p117 = scmp.ne.s32.totalorder %s106, %s107
      %p118 = scmp.eq.s32.totalorder %s18, 0
      %p119 = por %p117, %p118
      %p120 = scmp.ne.s32.totalorder %s106, %s107
      %p121 = scmp.eq.s32.totalorder %s19, 3
      %p122 = por %p120, %p121
      %p124 = scmp.ne.s32.totalorder %s107, %s123
      %p125 = scmp.eq.s32.totalorder %s19, 0
      %p126 = por %p124, %p125
      %s127 = ssub.s32 %s20, %s32
      %p128 = scmp.eq.s32.totalorder %s127, 0
      %s130 = sadd.s32 %s129, 1
      %s131 = scalar_select %p128, %s129, %s130
      %p134 = pneg %p128
      %p135 = scmp.eq.s32.totalorder %s13, 3
      %p136 = por %p134, %p135
      %p137 = scmp.ne.s32.totalorder %s129, %s132
      %p138 = scmp.eq.s32.totalorder %s13, 0
      %p139 = por %p137, %p138
      %p140 = scmp.ne.s32.totalorder %s129, %s132
      %p141 = scmp.eq.s32.totalorder %s18, 3
      %p142 = por %p140, %p141
      %p143 = scmp.ne.s32.totalorder %s132, %s133
      %p144 = scmp.eq.s32.totalorder %s18, 0
      %p145 = por %p143, %p144
      %p146 = scmp.ne.s32.totalorder %s132, %s133
      %p147 = scmp.eq.s32.totalorder %s19, 3
      %p148 = por %p146, %p147
      %p150 = scmp.ne.s32.totalorder %s133, %s149
      %p151 = scmp.eq.s32.totalorder %s19, 0
      %p152 = por %p150, %p151
      %s154 = sadd.s32 %s153, 1
      %p157 = scmp.eq.s32.totalorder %s13, 3
      %p158 = scmp.ne.s32.totalorder %s153, %s155
      %p159 = scmp.eq.s32.totalorder %s13, 0
      %p160 = por %p158, %p159
      %p161 = scmp.ne.s32.totalorder %s153, %s155
      %p162 = scmp.eq.s32.totalorder %s18, 3
      %p163 = por %p161, %p162
      %p164 = scmp.ne.s32.totalorder %s155, %s156
      %p165 = scmp.eq.s32.totalorder %s18, 0
      %p166 = por %p164, %p165
      %p167 = scmp.ne.s32.totalorder %s155, %s156
      %p168 = scmp.eq.s32.totalorder %s19, 3
      %p169 = por %p167, %p168
      %p171 = scmp.ne.s32.totalorder %s156, %s170
      %p172 = scmp.eq.s32.totalorder %s19, 0
      %p173 = por %p171, %p172
      %s175 = sadd.s32 %s174, 1
      %p178 = scmp.eq.s32.totalorder %s13, 3
      %p179 = scmp.ne.s32.totalorder %s174, %s176
      %p180 = scmp.eq.s32.totalorder %s13, 0
      %p181 = por %p179, %p180
      %p182 = scmp.ne.s32.totalorder %s174, %s176
      %p183 = scmp.eq.s32.totalorder %s18, 3
      %p184 = por %p182, %p183
      %p185 = scmp.ne.s32.totalorder %s176, %s177
      %p186 = scmp.eq.s32.totalorder %s18, 0
      %p187 = por %p185, %p186
      %p188 = scmp.ne.s32.totalorder %s176, %s177
      %p189 = scmp.eq.s32.totalorder %s19, 3
      %p190 = por %p188, %p189
      %p192 = scmp.ne.s32.totalorder %s177, %s191
      %p193 = scmp.eq.s32.totalorder %s19, 0
      %p194 = por %p192, %p193
      %p195 = scmp.le.s32.totalorder 1, %s13
      %p196 = scmp.lt.s32.totalorder %s13, 5
      %p197 = pnand %p195, %p196
      %p198 = pneg %p197
      // Predicated region
      $region9: #{gin4drug_struc_forward.1} parent=5 // pred_check
        _
      $region10: #{gin4drug_struc_forward.1} parent=5 // pred_check_branch
        %200 = sbr.rel (%p197) target = $region12
      $region11: #{gin4drug_struc_forward.1} parent=5 // pred_region
        %s201 = ssub.s32 %s13, 1
        // Predicated region
        $region13: #{gin4drug_struc_forward.1} parent=11 // pred_check
          %p202 = pneg %p46
        $region14: #{gin4drug_struc_forward.1} parent=11 // pred_check_branch
          %204 = sbr.rel (%p202) target = $region16
        $region15: #{gin4drug_struc_forward.1} parent=11 // pred_region
          _
        $region16: #{gin4drug_struc_forward.1} parent=11 // pred_fallthru
          _
        // Predicated region
        $region17: #{gin4drug_struc_forward.1} parent=11 // pred_check
          %p205 = pneg %p67
        $region18: #{gin4drug_struc_forward.1} parent=11 // pred_check_branch
          %207 = sbr.rel (%p205) target = $region20
        $region19: #{gin4drug_struc_forward.1} parent=11 // pred_region
          _
        $region20: #{gin4drug_struc_forward.1} parent=11 // pred_fallthru
          _
        // Predicated region
        $region21: #{gin4drug_struc_forward.1} parent=11 // pred_check
          %p208 = pneg %p166
        $region22: #{gin4drug_struc_forward.1} parent=11 // pred_check_branch
          %210 = sbr.rel (%p208) target = $region24
        $region23: #{gin4drug_struc_forward.1} parent=11 // pred_region
          _
        $region24: #{gin4drug_struc_forward.1} parent=11 // pred_fallthru
          _
      $region12: #{gin4drug_struc_forward.1} parent=5 // pred_fallthru
        _
      %p211 = scmp.lt.s32.totalorder %s13, 4
      // Predicated region
      $region25: #{gin4drug_struc_forward.1} parent=5 // pred_check
        %p212 = pneg %p211
      $region26: #{gin4drug_struc_forward.1} parent=5 // pred_check_branch
        %214 = sbr.rel (%p212) target = $region28
      $region27: #{gin4drug_struc_forward.1} parent=5 // pred_region
        // Predicated region
        $region29: #{gin4drug_struc_forward.1} parent=27 // pred_check
          %p215 = pneg %p87
        $region30: #{gin4drug_struc_forward.1} parent=27 // pred_check_branch
          %217 = sbr.rel (%p215) target = $region32
        $region31: #{gin4drug_struc_forward.1} parent=27 // pred_region
          %p218 = scmp.lt.s32.totalorder %s21, 1
          %s219 = scalar_select %p218, %s21, 1
          %s220 = smul.addr %s219, 4
          %s221 = scalar_lea.vmem %s2, %s220
        $region32: #{gin4drug_struc_forward.1} parent=27 // pred_fallthru
          _
        // Predicated region
        $region33: #{gin4drug_struc_forward.1} parent=27 // pred_check
          %p222 = pneg %p113
        $region34: #{gin4drug_struc_forward.1} parent=27 // pred_check_branch
          %224 = sbr.rel (%p222) target = $region36
        $region35: #{gin4drug_struc_forward.1} parent=27 // pred_region
          %p225 = scmp.lt.s32.totalorder %s20, 1
          %s226 = scalar_select %p225, %s20, 1
          %s227 = smul.addr %s226, 4
          %s228 = smul.addr %s227, 4
          %s229 = scalar_lea.vmem %s3, %s228
        $region36: #{gin4drug_struc_forward.1} parent=27 // pred_fallthru
          _
        // Predicated region
        $region37: #{gin4drug_struc_forward.1} parent=27 // pred_check
          %p230 = pneg %p139
        $region38: #{gin4drug_struc_forward.1} parent=27 // pred_check_branch
          %232 = sbr.rel (%p230) target = $region40
        $region39: #{gin4drug_struc_forward.1} parent=27 // pred_region
          %p233 = scmp.lt.s32.totalorder %s20, 1
          %s234 = scalar_select %p233, %s20, 1
          %s235 = scalar_lea.vmem %s4, %s234
        $region40: #{gin4drug_struc_forward.1} parent=27 // pred_fallthru
          _
      $region28: #{gin4drug_struc_forward.1} parent=5 // pred_fallthru
        _
      %p236 = scmp.le.s32.totalorder 1, %s13
      %p237 = scmp.lt.s32.totalorder %s13, 5
      %p238 = pnand %p236, %p237
      %p239 = pneg %p238
      // Predicated region
      $region41: #{gin4drug_struc_forward.1} parent=5 // pred_check
        _
      $region42: #{gin4drug_struc_forward.1} parent=5 // pred_check_branch
        %241 = sbr.rel (%p238) target = $region44
      $region43: #{gin4drug_struc_forward.1} parent=5 // pred_region
        %s242 = ssub.s32 %s13, 1
        %p243 = pneg %p46
        %p244 = pneg %p43
        %p245 = pneg %p67
        %p246 = pneg %p64
        %p247 = scmp.lt.s32.totalorder %s23, 1
        %s248 = scalar_select %p247, %s23, 1
        %s249 = smul.addr %s248, 4
        %s250 = scalar_lea.vmem %s2, %s249
        %p251 = pneg %p93
        %p252 = pneg %p90
        %p253 = scmp.lt.s32.totalorder %s22, 1
        %s254 = scalar_select %p253, %s22, 1
        %s255 = smul.addr %s254, 4
        %s256 = smul.addr %s255, 4
        %s257 = scalar_lea.vmem %s3, %s256
        %p258 = pneg %p119
        %p259 = pneg %p116
        %p260 = scmp.lt.s32.totalorder %s22, 1
        %s261 = scalar_select %p260, %s22, 1
        %s262 = scalar_lea.vmem %s4, %s261
        %p263 = pneg %p145
        %p264 = pneg %p142
        %p265 = pneg %p166
        %p266 = pneg %p163
        %p267 = pneg %p187
        %p268 = pneg %p184
        %p269 = scmp.lt.s32.totalorder %s23, 1
        %s270 = scalar_select %p269, %s23, 1
        %s271 = smul.addr %s270, 4
        %s272 = scalar_lea.vmem %s2, %s271
        %p273 = scmp.lt.s32.totalorder %s22, 1
        %s274 = scalar_select %p273, %s22, 1
        %s275 = smul.addr %s274, 4
        %s276 = smul.addr %s275, 4
        %s277 = scalar_lea.vmem %s3, %s276
        %p278 = scmp.lt.s32.totalorder %s22, 1
        %s279 = scalar_select %p278, %s22, 1
        %s280 = scalar_lea.vmem %s4, %s279
        %s282 = smul.u32 %s23, 8
        %p283 = scmp.eq.s32.totalorder %s22, 0
        %p284 = scmp.eq.s32.totalorder %s23, 0
        %p285 = pnand %p283, %p284
        %p286 = pneg %p285
        // Predicated region
        $region45: #{gin4drug_struc_forward.1} parent=43 // pred_check
          _
        $region46: #{gin4drug_struc_forward.1} parent=43 // pred_check_branch
          %288 = sbr.rel (%p285) target = $region48
        $region47: #{gin4drug_struc_forward.1} parent=43 // pred_region
          %v289 = vlaneseq
          %v290 = vand.u32 %v289, 127
          %v291 = vld [vmem:[%s0] sm:$0xff]
          %v292 = vld [vmem:[%s0 + $0x8] sm:$0xff]
          %293 = vset.pattern.permute.xlu0 0
          %294 = vperm.xlu0 %293, %v291
          %v295 = vpop.permute.xlu0 %294
          %296 = vset.pattern.permute.xlu0 0
          %297 = vperm.xlu0 %296, %v292
          %v298 = vpop.permute.xlu0 %297
          %vm299 = vcmp.eq.s32.totalorder %v290, %v295
          %vm300 = vcmp.eq.s32.totalorder %v290, %v298
          %v301 = vsel %vm299, 1, 0
          %v302 = vsel %vm300, 1, 0
          %v303 = vcvt.s32.f32 %v301
          %v304 = vcvt.s32.f32 %v302
          %v305 = vld [vmem:[%s1] sm:$0xff]
          %v306 = vld [vmem:[%s1 + $0x8] sm:$0x3]
          %vm307 = vcmask 80896
          %v309 = vsel %vm307, %v303, 0
          %v312 = vsel %vm307, %v304, 0
          %vm314 = vcmask 1041408
          %v316 = vsel %vm314, %v306, 0
          %318 = vmatprep.subr.mxu0 0.0
          %319 = vmatpush1.msra.mxu0 %v305
          %320 = vmatprep.subr.mxu0 0.0
          %321 = vmatpush1.msra.mxu0 %v316
          %322 = vmatprep.subr.mxu0 0.0
          %323 = vmatpush1.msra.mxu0 0.0
          %324 = vmatprep.subr.mxu0 0.0
          %325 = vmatpush1.msra.mxu0 0.0
          %326 = vmatprep.subr.mxu0 0.0
          %327 = vmatpush1.msra.mxu0 0.0
          %328 = vmatprep.subr.mxu0 0.0
          %329 = vmatpush1.msra.mxu0 0.0
          %330 = vmatprep.subr.mxu0 0.0
          %331 = vmatpush1.msra.mxu0 0.0
          %332 = vmatprep.subr.mxu0 0.0
          %333 = vmatpush1.msra.mxu0 0.0
          %334 = vmatprep.subr.mxu0 0.0
          %335 = vmatpush1.msra.mxu0 0.0
          %336 = vmatprep.subr.mxu0 0.0
          %337 = vmatpush1.msra.mxu0 0.0
          %338 = vmatprep.subr.mxu0 0.0
          %339 = vmatpush1.msra.mxu0 0.0
          %340 = vmatprep.subr.mxu0 0.0
          %341 = vmatpush1.msra.mxu0 0.0
          %342 = vmatprep.subr.mxu0 0.0
          %343 = vmatpush1.msra.mxu0 0.0
          %344 = vmatprep.subr.mxu0 0.0
          %345 = vmatpush1.msra.mxu0 0.0
          %346 = vmatprep.subr.mxu0 0.0
          %347 = vmatpush1.msra.mxu0 0.0
          %348 = vmatprep.subr.mxu0 0.0
          %349 = vmatpush1.msra.mxu0 0.0
          %350 = vmatprep.subr.mxu0 0.0
          %351 = vmatpush1.msra.mxu0 0.0
          %352 = vmatprep.subr.mxu0 0.0
          %353 = vmatpush1.msra.mxu0 0.0
          %354 = vmatprep.subr.mxu0 0.0
          %355 = vmatpush1.msra.mxu0 0.0
          %356 = vmatprep.subr.mxu0 0.0
          %357 = vmatpush1.msra.mxu0 0.0
          %358 = vmatprep.subr.mxu0 0.0
          %359 = vmatpush1.msra.mxu0 0.0
          %360 = vmatprep.subr.mxu0 0.0
          %361 = vmatpush1.msra.mxu0 0.0
          %362 = vmatprep.subr.mxu0 0.0
          %363 = vmatpush1.msra.mxu0 0.0
          %364 = vmatprep.subr.mxu0 0.0
          %365 = vmatpush1.msra.mxu0 0.0
          %366 = vmatprep.subr.mxu0 0.0
          %367 = vmatpush1.msra.mxu0 0.0
          %368 = vmatprep.subr.mxu0 0.0
          %369 = vmatpush1.msra.mxu0 0.0
          %370 = vmatprep.subr.mxu0 0.0
          %371 = vmatpush1.msra.mxu0 0.0
          %372 = vmatprep.subr.mxu0 0.0
          %373 = vmatpush1.msra.mxu0 0.0
          %374 = vmatprep.subr.mxu0 0.0
          %375 = vmatpush1.msra.mxu0 0.0
          %376 = vmatprep.subr.mxu0 0.0
          %377 = vmatpush1.msra.mxu0 0.0
          %378 = vmatprep.subr.mxu0 0.0
          %379 = vmatpush1.msra.mxu0 0.0
          %380 = vmatprep.subr.mxu0 0.0
          %381 = vmatpush1.msra.mxu0 0.0
          %382 = vmatprep.mubr.f32.mxu0 0.0
          %383 = vmatmul.mubr.f32.gmra.mrb[0].mxu0 %v309
          %v384 = vpop.f32.mrb[0].mxu0
          %v385 = vadd.f32 0.0, %v384
          %v386 = vpop.f32.mrb[0].mxu0
          %387 = vmatprep.mubr.f32.mxu0 0.0
          %388 = vmatmul.mubr.f32.gmra.mrb[0].mxu0 %v312
          %v389 = vpop.f32.mrb[0].mxu0
          %v390 = vadd.f32 0.0, %v389
          %v391 = vpop.f32.mrb[0].mxu0
          %392 = vdwg.mxu0
          %vm393 = vcmask 261120
          %394 = vst.msk [vmem:[#allocation2] sm:$0xff] %vm393, %v385
          %395 = vst.msk [vmem:[#allocation2 + $0x8] sm:$0xff] %vm393, %v390
        $region48: #{gin4drug_struc_forward.1} parent=43 // pred_fallthru
          _
        %v396 = vld [vmem:[%s272] sm:$0xf]
        %v397 = vld [vmem:[%s277] sm:$0xf]
        %v398 = vld [vmem:[%s277 + $0x4] sm:$0xf]
        %v399 = vld [vmem:[%s277 + $0x8] sm:$0xf]
        %v400 = vld [vmem:[%s277 + $0xc] sm:$0xf]
        %v401 = vld [vmem:[%s280] sm:$0x1]
        // Predicated region
        $region49: #{gin4drug_struc_forward.1} parent=43 // pred_check
          %p402 = pneg %p283
        $region50: #{gin4drug_struc_forward.1} parent=43 // pred_check_branch
          %404 = sbr.rel (%p402) target = $region52
        $region51: #{gin4drug_struc_forward.1} parent=43 // pred_region
          %v405 = vld [vmem:[#allocation2] sm:$0xff]
          %v406 = vld [vmem:[#allocation2 + $0x8] sm:$0xff]
          %v407 = vpack.c.bf16 %v406, %v405
          %vm408 = vcmask 130048
          %v410 = vsel %vm408, %v396, 0
          %412 = vmatprep.subr.bf16.mxu0 0
          %413 = vmatpush1.bf16.msra.mxu0 %v407
          %414 = vmatprep.subr.bf16.mxu0 0
          %415 = vmatpush1.bf16.msra.mxu0 0
          %416 = vmatprep.subr.bf16.mxu0 0
          %417 = vmatpush1.bf16.msra.mxu0 0
          %418 = vmatprep.subr.bf16.mxu0 0
          %419 = vmatpush1.bf16.msra.mxu0 0
          %420 = vmatprep.subr.bf16.mxu0 0
          %421 = vmatpush1.bf16.msra.mxu0 0
          %422 = vmatprep.subr.bf16.mxu0 0
          %423 = vmatpush1.bf16.msra.mxu0 0
          %424 = vmatprep.subr.bf16.mxu0 0
          %425 = vmatpush1.bf16.msra.mxu0 0
          %426 = vmatprep.subr.bf16.mxu0 0
          %427 = vmatpush1.bf16.msra.mxu0 0
          %428 = vmatprep.subr.bf16.mxu0 0
          %429 = vmatpush1.bf16.msra.mxu0 0
          %430 = vmatprep.subr.bf16.mxu0 0
          %431 = vmatpush1.bf16.msra.mxu0 0
          %432 = vmatprep.subr.bf16.mxu0 0
          %433 = vmatpush1.bf16.msra.mxu0 0
          %434 = vmatprep.subr.bf16.mxu0 0
          %435 = vmatpush1.bf16.msra.mxu0 0
          %436 = vmatprep.subr.bf16.mxu0 0
          %437 = vmatpush1.bf16.msra.mxu0 0
          %438 = vmatprep.subr.bf16.mxu0 0
          %439 = vmatpush1.bf16.msra.mxu0 0
          %440 = vmatprep.subr.bf16.mxu0 0
          %441 = vmatpush1.bf16.msra.mxu0 0
          %442 = vmatprep.subr.bf16.mxu0 0
          %443 = vmatpush1.bf16.msra.mxu0 0
          %444 = vmatprep.mubr.bf16.mxu0 0
          %445 = vmatmul.mubr.bf16.gmra.mrb[0].mxu0 %v410
          %v446 = vpop.f32.mrb[0].mxu0
          %v447 = vadd.f32 0.0, %v446
          %v448 = vpop.f32.mrb[0].mxu0
          %v449 = vpop.f32.mrb[0].mxu0
          %v450 = vpop.f32.mrb[0].mxu0
          %451 = vdwg.mxu0
          %s452 = scalar_lea.vmem [#allocation2], %s282
          %v453 = vld [vmem:[%s452] sm:$0xff]
          %v454 = vadd.f32 %v453, %v447
          %v455 = vpack.c.bf16 %v454, %v454
          %v457 = vlaneseq
          %v458 = vshrl.u32 %v457, 7
          %v459 = vsub.s32 0, %v458
          %v460 = vrot.slane %v401, %v459
          %v466 = vunpack.c.l.b16 %v397
          %v467 = vunpack.c.l.b16 %v398
          %v468 = vunpack.c.l.b16 %v399
          %v469 = vunpack.c.l.b16 %v400
          %v470 = vpack.c.b16 %v467, %v466
          %v471 = vpack.c.b16 %v469, %v468
          %vm474 = vcmask 261120
          %v476 = vsel %vm474, %v455, 0
          %478 = vmatprep.subr.bf16.mxu0 0
          %479 = vmatpush1.bf16.msra.mxu0 %v470
          %480 = vmatprep.subr.bf16.mxu0 0
          %481 = vmatpush1.bf16.msra.mxu0 %v471
          %482 = vmatprep.subr.bf16.mxu0 0
          %483 = vmatpush1.bf16.msra.mxu0 0
          %484 = vmatprep.subr.bf16.mxu0 0
          %485 = vmatpush1.bf16.msra.mxu0 0
          %486 = vmatprep.subr.bf16.mxu0 0
          %487 = vmatpush1.bf16.msra.mxu0 0
          %488 = vmatprep.subr.bf16.mxu0 0
          %489 = vmatpush1.bf16.msra.mxu0 0
          %490 = vmatprep.subr.bf16.mxu0 0
          %491 = vmatpush1.bf16.msra.mxu0 0
          %492 = vmatprep.subr.bf16.mxu0 0
          %493 = vmatpush1.bf16.msra.mxu0 0
          %494 = vmatprep.subr.bf16.mxu0 0
          %495 = vmatpush1.bf16.msra.mxu0 0
          %496 = vmatprep.subr.bf16.mxu0 0
          %497 = vmatpush1.bf16.msra.mxu0 0
          %498 = vmatprep.subr.bf16.mxu0 0
          %499 = vmatpush1.bf16.msra.mxu0 0
          %500 = vmatprep.subr.bf16.mxu0 0
          %501 = vmatpush1.bf16.msra.mxu0 0
          %502 = vmatprep.subr.bf16.mxu0 0
          %503 = vmatpush1.bf16.msra.mxu0 0
          %504 = vmatprep.subr.bf16.mxu0 0
          %505 = vmatpush1.bf16.msra.mxu0 0
          %506 = vmatprep.subr.bf16.mxu0 0
          %507 = vmatpush1.bf16.msra.mxu0 0
          %508 = vmatprep.subr.bf16.mxu0 0
          %509 = vmatpush1.bf16.msra.mxu0 0
          %510 = vmatprep.mubr.bf16.mxu0 0
          %511 = vmatmul.mubr.bf16.gmra.mrb[0].mxu0 %v476
          %v512 = vpop.f32.mrb[0].mxu0
          %v513 = vadd.f32 %v460, %v512
          %v514 = vpop.f32.mrb[0].mxu0
          %v515 = vpop.f32.mrb[0].mxu0
          %v516 = vpop.f32.mrb[0].mxu0
          %517 = vdwg.mxu0
          %v518 = vmax.f32 %v513, 0.0
          %s519 = scalar_lea.vmem [#allocation3], %s282
          %520 = vst.msk [vmem:[%s519] sm:$0xff] %vm474, %v518
        $region52: #{gin4drug_struc_forward.1} parent=43 // pred_fallthru
          _
        %p521 = scmp.eq.s32.totalorder %s22, 1
        // Predicated region
        $region53: #{gin4drug_struc_forward.1} parent=43 // pred_check
          %p522 = pneg %p521
        $region54: #{gin4drug_struc_forward.1} parent=43 // pred_check_branch
          %524 = sbr.rel (%p522) target = $region56
        $region55: #{gin4drug_struc_forward.1} parent=43 // pred_region
          %v525 = vld [vmem:[#allocation3] sm:$0xff]
          %v526 = vld [vmem:[#allocation3 + $0x8] sm:$0xff]
          %v527 = vpack.c.bf16 %v526, %v525
          %vm528 = vcmask 130048
          %v530 = vsel %vm528, %v396, 0
          %532 = vmatprep.subr.bf16.mxu0 0
          %533 = vmatpush1.bf16.msra.mxu0 %v527
          %534 = vmatprep.subr.bf16.mxu0 0
          %535 = vmatpush1.bf16.msra.mxu0 0
          %536 = vmatprep.subr.bf16.mxu0 0
          %537 = vmatpush1.bf16.msra.mxu0 0
          %538 = vmatprep.subr.bf16.mxu0 0
          %539 = vmatpush1.bf16.msra.mxu0 0
          %540 = vmatprep.subr.bf16.mxu0 0
          %541 = vmatpush1.bf16.msra.mxu0 0
          %542 = vmatprep.subr.bf16.mxu0 0
          %543 = vmatpush1.bf16.msra.mxu0 0
          %544 = vmatprep.subr.bf16.mxu0 0
          %545 = vmatpush1.bf16.msra.mxu0 0
          %546 = vmatprep.subr.bf16.mxu0 0
          %547 = vmatpush1.bf16.msra.mxu0 0
          %548 = vmatprep.subr.bf16.mxu0 0
          %549 = vmatpush1.bf16.msra.mxu0 0
          %550 = vmatprep.subr.bf16.mxu0 0
          %551 = vmatpush1.bf16.msra.mxu0 0
          %552 = vmatprep.subr.bf16.mxu0 0
          %553 = vmatpush1.bf16.msra.mxu0 0
          %554 = vmatprep.subr.bf16.mxu0 0
          %555 = vmatpush1.bf16.msra.mxu0 0
          %556 = vmatprep.subr.bf16.mxu0 0
          %557 = vmatpush1.bf16.msra.mxu0 0
          %558 = vmatprep.subr.bf16.mxu0 0
          %559 = vmatpush1.bf16.msra.mxu0 0
          %560 = vmatprep.subr.bf16.mxu0 0
          %561 = vmatpush1.bf16.msra.mxu0 0
          %562 = vmatprep.subr.bf16.mxu0 0
          %563 = vmatpush1.bf16.msra.mxu0 0
          %564 = vmatprep.mubr.bf16.mxu0 0
          %565 = vmatmul.mubr.bf16.gmra.mrb[0].mxu0 %v530
          %v566 = vpop.f32.mrb[0].mxu0
          %v567 = vadd.f32 0.0, %v566
          %v568 = vpop.f32.mrb[0].mxu0
          %v569 = vpop.f32.mrb[0].mxu0
          %v570 = vpop.f32.mrb[0].mxu0
          %571 = vdwg.mxu0
          %s572 = scalar_lea.vmem [#allocation3], %s282
          %v573 = vld [vmem:[%s572] sm:$0xff]
          %v574 = vadd.f32 %v573, %v567
          %v575 = vpack.c.bf16 %v574, %v574
          %v577 = vlaneseq
          %v578 = vshrl.u32 %v577, 7
          %v579 = vsub.s32 0, %v578
          %v580 = vrot.slane %v401, %v579
          %v586 = vunpack.c.l.b16 %v397
          %v587 = vunpack.c.l.b16 %v398
          %v588 = vunpack.c.l.b16 %v399
          %v589 = vunpack.c.l.b16 %v400
          %v590 = vpack.c.b16 %v587, %v586
          %v591 = vpack.c.b16 %v589, %v588
          %vm594 = vcmask 261120
          %v596 = vsel %vm594, %v575, 0
          %598 = vmatprep.subr.bf16.mxu0 0
          %599 = vmatpush1.bf16.msra.mxu0 %v590
          %600 = vmatprep.subr.bf16.mxu0 0
          %601 = vmatpush1.bf16.msra.mxu0 %v591
          %602 = vmatprep.subr.bf16.mxu0 0
          %603 = vmatpush1.bf16.msra.mxu0 0
          %604 = vmatprep.subr.bf16.mxu0 0
          %605 = vmatpush1.bf16.msra.mxu0 0
          %606 = vmatprep.subr.bf16.mxu0 0
          %607 = vmatpush1.bf16.msra.mxu0 0
          %608 = vmatprep.subr.bf16.mxu0 0
          %609 = vmatpush1.bf16.msra.mxu0 0
          %610 = vmatprep.subr.bf16.mxu0 0
          %611 = vmatpush1.bf16.msra.mxu0 0
          %612 = vmatprep.subr.bf16.mxu0 0
          %613 = vmatpush1.bf16.msra.mxu0 0
          %614 = vmatprep.subr.bf16.mxu0 0
          %615 = vmatpush1.bf16.msra.mxu0 0
          %616 = vmatprep.subr.bf16.mxu0 0
          %617 = vmatpush1.bf16.msra.mxu0 0
          %618 = vmatprep.subr.bf16.mxu0 0
          %619 = vmatpush1.bf16.msra.mxu0 0
          %620 = vmatprep.subr.bf16.mxu0 0
          %621 = vmatpush1.bf16.msra.mxu0 0
          %622 = vmatprep.subr.bf16.mxu0 0
          %623 = vmatpush1.bf16.msra.mxu0 0
          %624 = vmatprep.subr.bf16.mxu0 0
          %625 = vmatpush1.bf16.msra.mxu0 0
          %626 = vmatprep.subr.bf16.mxu0 0
          %627 = vmatpush1.bf16.msra.mxu0 0
          %628 = vmatprep.subr.bf16.mxu0 0
          %629 = vmatpush1.bf16.msra.mxu0 0
          %630 = vmatprep.mubr.bf16.mxu0 0
          %631 = vmatmul.mubr.bf16.gmra.mrb[0].mxu0 %v596
          %v632 = vpop.f32.mrb[0].mxu0
          %v633 = vadd.f32 %v580, %v632
          %v634 = vpop.f32.mrb[0].mxu0
          %v635 = vpop.f32.mrb[0].mxu0
          %v636 = vpop.f32.mrb[0].mxu0
          %637 = vdwg.mxu0
          %s638 = scalar_lea.vmem [#allocation4], %s282
          %639 = vst.msk [vmem:[%s638] sm:$0xff] %vm594, %v633
        $region56: #{gin4drug_struc_forward.1} parent=43 // pred_fallthru
          _
        %p640 = scmp.eq.s32.totalorder %s23, 1
        %p641 = pnand %p521, %p640
        %p642 = pneg %p641
        // Predicated region
        $region57: #{gin4drug_struc_forward.1} parent=43 // pred_check
          _
        $region58: #{gin4drug_struc_forward.1} parent=43 // pred_check_branch
          %644 = sbr.rel (%p641) target = $region60
        $region59: #{gin4drug_struc_forward.1} parent=43 // pred_region
          %v645 = vld [vmem:[%s5] sm:$0x1]
          %v646 = vld [vmem:[#allocation4] sm:$0xff]
          %v647 = vld [vmem:[#allocation4 + $0x8] sm:$0xff]
          %v648 = vpack.c.bf16 %v647, %v646
          %vm649 = vcmask 130048
          %v651 = vsel %vm649, %v645, 0
          %653 = vmatprep.subr.bf16.mxu0 0
          %654 = vmatpush1.bf16.msra.mxu0 %v648
          %655 = vmatprep.subr.bf16.mxu0 0
          %656 = vmatpush1.bf16.msra.mxu0 0
          %657 = vmatprep.subr.bf16.mxu0 0
          %658 = vmatpush1.bf16.msra.mxu0 0
          %659 = vmatprep.subr.bf16.mxu0 0
          %660 = vmatpush1.bf16.msra.mxu0 0
          %661 = vmatprep.subr.bf16.mxu0 0
          %662 = vmatpush1.bf16.msra.mxu0 0
          %663 = vmatprep.subr.bf16.mxu0 0
          %664 = vmatpush1.bf16.msra.mxu0 0
          %665 = vmatprep.subr.bf16.mxu0 0
          %666 = vmatpush1.bf16.msra.mxu0 0
          %667 = vmatprep.subr.bf16.mxu0 0
          %668 = vmatpush1.bf16.msra.mxu0 0
          %669 = vmatprep.subr.bf16.mxu0 0
          %670 = vmatpush1.bf16.msra.mxu0 0
          %671 = vmatprep.subr.bf16.mxu0 0
          %672 = vmatpush1.bf16.msra.mxu0 0
          %673 = vmatprep.subr.bf16.mxu0 0
          %674 = vmatpush1.bf16.msra.mxu0 0
          %675 = vmatprep.subr.bf16.mxu0 0
          %676 = vmatpush1.bf16.msra.mxu0 0
          %677 = vmatprep.subr.bf16.mxu0 0
          %678 = vmatpush1.bf16.msra.mxu0 0
          %679 = vmatprep.subr.bf16.mxu0 0
          %680 = vmatpush1.bf16.msra.mxu0 0
          %681 = vmatprep.subr.bf16.mxu0 0
          %682 = vmatpush1.bf16.msra.mxu0 0
          %683 = vmatprep.subr.bf16.mxu0 0
          %684 = vmatpush1.bf16.msra.mxu0 0
          %685 = vmatprep.mubr.bf16.mxu0 0
          %686 = vmatmul.mubr.bf16.gmra.mrb[0].mxu0 %v651
          %v687 = vpop.f32.mrb[0].mxu0
          %v688 = vadd.f32 0.0, %v687
          %v689 = vpop.f32.mrb[0].mxu0
          %v690 = vpop.f32.mrb[0].mxu0
          %v691 = vpop.f32.mrb[0].mxu0
          %692 = vdwg.mxu0
          %vm693 = vcmask 254976
          %694 = vst.msk [vmem:[#allocation5] sm:$0x3] %vm693, %v688
        $region60: #{gin4drug_struc_forward.1} parent=43 // pred_fallthru
          _
        // Predicated region
        $region61: #{gin4drug_struc_forward.1} parent=43 // pred_check
          %p695 = pneg %p184
        $region62: #{gin4drug_struc_forward.1} parent=43 // pred_check_branch
          %697 = sbr.rel (%p695) target = $region64
        $region63: #{gin4drug_struc_forward.1} parent=43 // pred_region
          %s699 = ssub.s32 32, 32
          %700 = vsyncadd [#allocation6], %s699
          %s702 = sshll.u32 [#allocation5], 4
          %s703 = int_to_ptr.vmem [resolvable:$true] %s702
          %705 = dma.vmem_to_hbm [thread:$0]  %s703, 32, %s6, [#allocation6]
        $region64: #{gin4drug_struc_forward.1} parent=43 // pred_fallthru
          _
        // Predicated region
        $region65: #{gin4drug_struc_forward.1} parent=43 // pred_check
          %p706 = pneg %p184
        $region66: #{gin4drug_struc_forward.1} parent=43 // pred_check_branch
          %708 = sbr.rel (%p706) target = $region68
        $region67: #{gin4drug_struc_forward.1} parent=43 // pred_region
          %709 = dma.done [#allocation6], 32
        $region68: #{gin4drug_struc_forward.1} parent=43 // pred_fallthru
          _
      $region44: #{gin4drug_struc_forward.1} parent=5 // pred_fallthru
        _
      %p710 = scmp.le.s32.totalorder 2, %s13
      // Predicated region
      $region69: #{gin4drug_struc_forward.1} parent=5 // pred_check
        %p711 = pneg %p710
      $region70: #{gin4drug_struc_forward.1} parent=5 // pred_check_branch
        %713 = sbr.rel (%p711) target = $region72
      $region71: #{gin4drug_struc_forward.1} parent=5 // pred_region
        %s714 = ssub.s32 %s13, 2
      $region72: #{gin4drug_struc_forward.1} parent=5 // pred_fallthru
        _
    $region6: #{gin4drug_struc_forward.1} parent=1 // loop_footer
      %s17 = sadd.s32 1, %s13
    $region7: #{gin4drug_struc_forward.1} parent=1 // loop_footer_branch
      %12 = sbr.rel target = $region3
    $region8: #{gin4drug_struc_forward.1} parent=1 // loop_exit
      _
    %715 = vsyncpa [#allocation6], 1
    %s716 = scalar_lea.sflag [#allocation6], 1
    %717 = vsyncpa %s716, 1

</llo_original>
